<compile_context>
chip_gen: v6e
topology: v6e:2x2x1
jax: 0.10.0
libtpu: 0.0.40
codegen_flags: <defaults>
</compile_context>

<pallas_src>
import functools

import jax
import jax.numpy as jnp
from jax.experimental import pallas as pl
from jax.experimental.pallas import tpu as pltpu


# ----------------------------------------------------------------------------
# Pallas kernel 1: synthetic inner model (the hot path the wrapper calls).
# Single block; x viewed as (B*C, HW) (lane-dense, full vregs).
# ----------------------------------------------------------------------------
def _inner_model_kernel(x_ref, w1_ref, w2_ref, bias_ref, o_ref):
    x = x_ref[...].astype(jnp.float32)                    # (BC, HW)

    # Channel mix 1: block-diagonal kron(I_B, w1.T) @ x  -> one tiny MXU dot.
    h = jnp.dot(w1_ref[...], x, preferred_element_type=jnp.float32)
    h = h + bias_ref[...]                                 # (BC, 1) lane-broadcast

    # NOTE: tanh-approx GELU (EUP tanh). PyTorch F.gelu defaults to exact erf;
    # the tanh form is kept for guaranteed Mosaic lowering of this synthetic
    # inner model (wrapper semantics do not depend on the choice).
    h = jax.nn.gelu(h, approximate=True)

    # Channel mix 2: block-diagonal kron(I_B, w2.T) @ h.
    o_ref[...] = jnp.dot(w2_ref[...], h,
                         preferred_element_type=jnp.float32).astype(o_ref.dtype)


def make_inner_model(params, B, C, H, W, L, D):
    """Returns inner_model(x_nchw, timesteps, context) -> y_nchw."""
    HW = H * W
    BC = B * C
    w1, wt, wctx, w2 = params

    # Precompute block-diagonal channel-mix matrices once (host side):
    #   h_flat = kron(I_B, w.T) @ x_flat  ==  per-batch  h[b] = w.T @ x[b]
    eye_b = jnp.eye(B, dtype=jnp.float32)
    w1_bd = jnp.kron(eye_b, w1.T)        # (BC, BC)
    w2_bd = jnp.kron(eye_b, w2.T)        # (BC, BC)

    @jax.jit
    def inner_model(x_nchw, timesteps, context):
        # NCHW stays NCHW: only a free contiguous reshape to (B*C, HW).
        x = x_nchw.reshape(BC, HW)
        # Support scalar or per-sample [B] timesteps.
        t = jnp.broadcast_to(
            jnp.asarray(timesteps, jnp.float32).reshape(-1), (B,))
        # Hoisted tiny bias: (B,1)*(1,C) + (B,D)@(D,C) -> (B,C). Trivial in XLA.
        bias = (t[:, None] * wt
                + jnp.mean(context.astype(jnp.float32), axis=1) @ wctx)
        bias_col = bias.reshape(BC, 1)

        out = pl.pallas_call(
            _inner_model_kernel,
            out_shape=jax.ShapeDtypeStruct((BC, HW), x_nchw.dtype),
            # Single block, no grid: whole (8, 256) tile + tiny weights in VMEM.
        )(x, w1_bd, w2_bd, bias_col)
        return out.reshape(B, C, H, W)

    return inner_model


# ----------------------------------------------------------------------------
# Pallas kernel 2: L1 cache-error metric  mean(|a - b|)
# Tiled lane-dense reduction; block-shaped VMEM partial accumulator (VPU only
# in steady state); final reduce + *1/n in the finalize branch.
# ----------------------------------------------------------------------------
def _l1_kernel(a_ref, b_ref, o_ref, acc_ref, *, rows_total, block_rows,
               need_mask, inv_n):
    i = pl.program_id(0)

    @pl.when(i == 0)
    def _():
        acc_ref[...] = jnp.zeros_like(acc_ref)

    d = jnp.abs(a_ref[...].astype(jnp.float32) - b_ref[...].astype(jnp.float32))
    if need_mask:  # only the ragged last row-block needs masking
        rid = jax.lax.broadcasted_iota(jnp.int32, d.shape, 0) + i * block_rows
        d = jnp.where(rid < rows_total, d, 0.0)
    acc_ref[...] += d

    @pl.when(i == pl.num_programs(0) - 1)
    def _():
        o_ref[...] = jnp.sum(acc_ref[...], keepdims=True) * inv_n


@jax.jit
def l1_mean_distance(a, b):
    n = a.size
    a_flat = a.reshape(-1)
    b_flat = b.reshape(-1)

    # Pick the widest lane count that divides n -> no padding copy needed.
    lane = next((l for l in (1024, 512, 256, 128) if n % l == 0), None)
    if lane is None:
        # TODO(synk): truly ragged n falls back to one zero-pad copy; the
        # common activation shapes (multiples of 128) never hit this path.
        lane = 128
        pad = (-n) % lane
        a_flat = jnp.pad(a_flat, (0, pad))
        b_flat = jnp.pad(b_flat, (0, pad))

    a2 = a_flat.reshape(-1, lane)
    b2 = b_flat.reshape(-1, lane)
    rows_total = a2.shape[0]

    # ~1 MiB (f32) per input block; cap keeps 2 inputs x 2 buffers + scratch
    # well inside v5e's 16 MiB scoped default and v7x's 64 MiB physical VMEM.
    max_rows = max(8, (1 << 20) // (lane * 4))
    if rows_total <= max_rows:
        block_rows = rows_total           # block == full array dims (allowed)
        grid = 1
        need_mask = False
    else:
        block_rows = max_rows - (max_rows % 8)
        grid = pl.cdiv(rows_total, block_rows)
        need_mask = (rows_total % block_rows != 0)

    # TODO(synk): for very large tensors on v7x, a leading 2-way "parallel"
    # axis (one partial sum per TensorCore, combined in XLA) would use both
    # cores' HBM bandwidth.

    out = pl.pallas_call(
        functools.partial(_l1_kernel, rows_total=rows_total,
                          block_rows=block_rows, need_mask=need_mask,
                          inv_n=1.0 / float(n)),
        out_shape=jax.ShapeDtypeStruct((1, 1), jnp.float32),
        grid=(grid,),
        in_specs=[
            pl.BlockSpec((block_rows, lane), lambda i: (i, 0)),
            pl.BlockSpec((block_rows, lane), lambda i: (i, 0)),
        ],
        out_specs=pl.BlockSpec((1, 1), lambda i: (0, 0)),
        scratch_shapes=[pltpu.VMEM((block_rows, lane), jnp.float32)],
        compiler_params=pltpu.CompilerParams(
            dimension_semantics=("arbitrary",),
            vmem_limit_bytes=32 << 20),
    )(a2, b2)
    return out[0, 0]


# ----------------------------------------------------------------------------
# The wrapper: stateful EasyCache logic (host-side control flow, like PyTorch)
# ----------------------------------------------------------------------------
class EasyCacheModelWrapper:
    def __init__(self, inner_model, easycache_threshold,
                 easycache_warmup_steps, total_steps):
        self.inner_model = inner_model
        self.easycache_cnt = 0
        self.easycache_thresh = easycache_threshold
        self.easycache_ret_steps = easycache_warmup_steps * 2
        self.easycache_cutoff_steps = total_steps * 2 - 2
        self.easycache_accumulated_error_even = 0
        self.easycache_should_calc_current_pair = True
        self.easycache_previous_raw_input_even = None
        self.easycache_previous_raw_output_even = None
        self.easycache_previous_raw_output_odd = None
        self.easycache_prev_prev_raw_input_even = None
        self.easycache_cache_even = None
        self.easycache_cache_odd = None
        self.easycache_num_steps = total_steps * 2
        self.easycache_k = None
        self.cache = {}

    # _generate_cache_key is not used by forward(); omitted.
    # TODO(synk): string-keyed host dict `self.cache` has no Pallas equivalent.

    def forward(self, x, timesteps, context, **kwargs):
        is_even = self.easycache_cnt % 2 == 0
        if (self.easycache_cnt < self.easycache_ret_steps
                or self.easycache_should_calc_current_pair):
            output = self.inner_model(x, timesteps, context, **kwargs)
            if is_even:
                self.easycache_previous_raw_input_even = x
                self.easycache_previous_raw_output_even = output
                self.easycache_cache_even = output
            else:
                self.easycache_previous_raw_output_odd = output
                self.easycache_cache_odd = output
            self.easycache_should_calc_current_pair = False
            self.easycache_accumulated_error_even = 0
        else:
            if is_even:
                if self.easycache_cache_even is not None:
                    output = self.easycache_cache_even
                else:
                    print('EasyCache: Even cache miss, performing full computation.')
                    output = self.inner_model(x, timesteps, context, **kwargs)
            elif self.easycache_cache_odd is not None:
                output = self.easycache_cache_odd
            else:
                print('EasyCache: Odd cache miss, performing full computation.')
                output = self.inner_model(x, timesteps, context, **kwargs)

            if (is_even and self.easycache_previous_raw_input_even is not None
                    and self.easycache_cnt > 0):
                if self.easycache_cnt == self.easycache_ret_steps:
                    self.easycache_prev_prev_raw_input_even = \
                        self.easycache_previous_raw_input_even
                elif self.easycache_prev_prev_raw_input_even is not None:
                    l1 = l1_mean_distance(
                        x, self.easycache_prev_prev_raw_input_even)
                    # TODO(synk): float(l1) is a host sync; the threshold
                    # branch below is host control flow (mirrors PyTorch
                    # `.item()`), so only this single scalar is fetched.
                    self.easycache_accumulated_error_even += float(l1)
                if self.easycache_accumulated_error_even > self.easycache_thresh:
                    self.easycache_should_calc_current_pair = True
                    self.easycache_accumulated_error_even = 0
                self.easycache_prev_prev_raw_input_even = \
                    self.easycache_previous_raw_input_even
                self.easycache_previous_raw_input_even = x
                self.easycache_previous_raw_output_even = output
        self.easycache_cnt += 1
        return output

    __call__ = forward


# ----------------------------------------------------------------------------
if __name__ == "__main__":
    B, C, H, W = 2, 4, 16, 16
    L, D = 8, 32

    key = jax.random.PRNGKey(0)
    kx, kc, k1, k2, k3, k4, kn = jax.random.split(key, 7)
    x0 = jax.random.normal(kx, (B, C, H, W), jnp.float32)
    context = jax.random.normal(kc, (B, L, D), jnp.float32)

    # Deterministic synthetic inner-model parameters.
    w1 = jax.random.normal(k1, (C, C), jnp.float32) * 0.2
    wt = jax.random.normal(k2, (1, C), jnp.float32) * 0.1
    wctx = jax.random.normal(k3, (D, C), jnp.float32) * 0.1
    w2 = jax.random.normal(k4, (C, C), jnp.float32) * 0.2

    inner_model = make_inner_model((w1, wt, wctx, w2), B, C, H, W, L, D)

    total_steps = 4
    wrapper = EasyCacheModelWrapper(
        inner_model,
        easycache_threshold=0.05,
        easycache_warmup_steps=1,
        total_steps=total_steps,
    )

    out = None
    for step in range(total_steps * 2):
        t = 1.0 - step / float(total_steps * 2)
        drift = 0.02 * step * jax.random.normal(
            jax.random.fold_in(kn, step), x0.shape, jnp.float32)
        out = wrapper(x0 + drift, t, context)

    jax.block_until_ready(out)
    print("KERNEL_OK")
</pallas_src>

<mosaic_0001>
module attributes {stable_mosaic.version = 11 : i64} {
  func.func @_inner_model_kernel(%arg0: memref<8x256xf32, #tpu.memory_space<vmem>>, %arg1: memref<8x8xf32, #tpu.memory_space<vmem>>, %arg2: memref<8x8xf32, #tpu.memory_space<vmem>>, %arg3: memref<8x1xf32, #tpu.memory_space<vmem>>, %arg4: memref<8x256xf32, #tpu.memory_space<vmem>>) attributes {dimension_semantics = [], scalar_prefetch = 0 : i64, scratch_operands = 0 : i64, tpu.core_type = #tpu.core_type<tc>} {
    %c0 = arith.constant 0 : index
    %c0_0 = arith.constant 0 : index
    %0 = vector.load %arg0[%c0, %c0_0] : memref<8x256xf32, #tpu.memory_space<vmem>>, vector<8x256xf32>
    %c0_1 = arith.constant 0 : index
    %c0_2 = arith.constant 0 : index
    %1 = vector.load %arg1[%c0_1, %c0_2] : memref<8x8xf32, #tpu.memory_space<vmem>>, vector<8x8xf32>
    %cst = arith.constant dense<0.000000e+00> : vector<8x256xf32>
    %2 = tpu.matmul %1, %0, %cst {dimension_numbers = #tpu.dot_dimension_numbers<[1], [0], [0], [1], [0, 0, 1, 1], [], []>} : vector<8x8xf32>, vector<8x256xf32>, vector<8x256xf32> -> vector<8x256xf32>
    %c0_3 = arith.constant 0 : index
    %c0_4 = arith.constant 0 : index
    %3 = vector.load %arg3[%c0_3, %c0_4] : memref<8x1xf32, #tpu.memory_space<vmem>>, vector<8x1xf32>
    %4 = vector.broadcast %3 : vector<8x1xf32> to vector<8x256xf32>
    %5 = arith.addf %2, %4 : vector<8x256xf32>
    %6 = arith.mulf %5, %5 : vector<8x256xf32>
    %7 = arith.mulf %5, %6 : vector<8x256xf32>
    %cst_5 = arith.constant 4.471500e-02 : f32
    %8 = vector.broadcast %cst_5 : f32 to vector<8x256xf32>
    %9 = arith.mulf %8, %7 : vector<8x256xf32>
    %10 = arith.addf %5, %9 : vector<8x256xf32>
    %cst_6 = arith.constant 0.797884583 : f32
    %11 = vector.broadcast %cst_6 : f32 to vector<8x256xf32>
    %12 = arith.mulf %11, %10 : vector<8x256xf32>
    %13 = math.tanh %12 : vector<8x256xf32>
    %cst_7 = arith.constant 1.000000e+00 : f32
    %14 = vector.broadcast %cst_7 : f32 to vector<8x256xf32>
    %15 = arith.addf %14, %13 : vector<8x256xf32>
    %cst_8 = arith.constant 5.000000e-01 : f32
    %16 = vector.broadcast %cst_8 : f32 to vector<8x256xf32>
    %17 = arith.mulf %16, %15 : vector<8x256xf32>
    %18 = arith.mulf %5, %17 : vector<8x256xf32>
    %c0_9 = arith.constant 0 : index
    %c0_10 = arith.constant 0 : index
    %19 = vector.load %arg2[%c0_9, %c0_10] : memref<8x8xf32, #tpu.memory_space<vmem>>, vector<8x8xf32>
    %cst_11 = arith.constant dense<0.000000e+00> : vector<8x256xf32>
    %20 = tpu.matmul %19, %18, %cst_11 {dimension_numbers = #tpu.dot_dimension_numbers<[1], [0], [0], [1], [0, 0, 1, 1], [], []>} : vector<8x8xf32>, vector<8x256xf32>, vector<8x256xf32> -> vector<8x256xf32>
    %c0_12 = arith.constant 0 : index
    %c0_13 = arith.constant 0 : index
    %21 = vector.load %arg4[%c0_12, %c0_13] : memref<8x256xf32, #tpu.memory_space<vmem>>, vector<8x256xf32>
    tpu.vector_store %arg4[%c0_12, %c0_13], %20 {strides = array<i32>} : memref<8x256xf32, #tpu.memory_space<vmem>>, vector<8x256xf32>,
    return
  }
}

</mosaic_0001>

<llo_original>
// kernel: inner_model.1
$region0: #{inner_model.1}
  #allocation0 [shape = 'u32[]', space=smem, size = 0x4, offset = 0x4, fixed_abs, tag = 'smem constant byte address 0x4 - core index']
  #allocation1 [shape = 'u32[144,128]{1,0:T(1,128)}', space=vmem, size = 0x12000, scoped, tag = 'internal scratch']
  %s0 = inlined_call_operand.vmem [shape: f32[8,256], index: 0, kind: input, shape index: {}]
  %s1 = inlined_call_operand.vmem [shape: f32[8,8], index: 1, kind: input, shape index: {}]
  %s2 = inlined_call_operand.vmem [shape: f32[8,8], index: 2, kind: input, shape index: {}]
  %s3 = inlined_call_operand.vmem [shape: f32[8,1], index: 3, kind: input, shape index: {}]
  %s4 = inlined_call_operand.vmem [shape: f32[8,256], index: 4, kind: output, shape index: {}]
  %s5 = sld [smem:[#allocation0]]
  $region26: #{inner_model.1} parent=0
    _
  %s7 = ssub.s32 1, %s5
  %s8 = scalar_select 0, %s7, %s5
  // Predicated region
  $region2: #{inner_model.1} parent=0 // pred_check
    _
  $region3: #{inner_model.1} parent=0 // pred_check_branch
    %10 = sbr.rel (0) target = $region5
  $region4: #{inner_model.1} parent=0 // pred_region
    _
  $region5: #{inner_model.1} parent=0 // pred_fallthru
    _
  // Predicated region
  $region6: #{inner_model.1} parent=0 // pred_check
    _
  $region7: #{inner_model.1} parent=0 // pred_check_branch
    %12 = sbr.rel (0) target = $region9
  $region8: #{inner_model.1} parent=0 // pred_region
    _
  $region9: #{inner_model.1} parent=0 // pred_fallthru
    _
  // Predicated region
  $region10: #{inner_model.1} parent=0 // pred_check
    _
  $region11: #{inner_model.1} parent=0 // pred_check_branch
    %14 = sbr.rel (0) target = $region13
  $region12: #{inner_model.1} parent=0 // pred_region
    _
  $region13: #{inner_model.1} parent=0 // pred_fallthru
    _
  // Predicated region
  $region14: #{inner_model.1} parent=0 // pred_check
    _
  $region15: #{inner_model.1} parent=0 // pred_check_branch
    %16 = sbr.rel (0) target = $region17
  $region16: #{inner_model.1} parent=0 // pred_region
    _
  $region17: #{inner_model.1} parent=0 // pred_fallthru
    _
  %v17 = vld [vmem:[%s0] sm:$0xff]
  %v18 = vld [vmem:[%s0 + $0x8] sm:$0xff]
  %v19 = vld [vmem:[%s1] sm:$0xff]
  %v20 = vld [vmem:[%s3] sm:$0xff]
  %22 = vset.pattern.permute.xlu0 0
  %23 = vperm.xlu0 %22, %v20
  %v24 = vpop.permute.xlu0 %23
  %vm26 = vcmask 64512
  %v28 = vsel %vm26, %v19, 0
  %30 = vmatprep.subr.mxu0 0.0
  %31 = vmatpush1.msra.mxu0 0.0
  %32 = vmatprep.subr.mxu0 0.0
  %33 = vmatpush1.msra.mxu0 0.0
  %34 = vmatprep.subr.mxu0 0.0
  %35 = vmatpush1.msra.mxu0 0.0
  %36 = vmatprep.subr.mxu0 0.0
  %37 = vmatpush1.msra.mxu0 0.0
  %38 = vmatprep.subr.mxu0 0.0
  %39 = vmatpush1.msra.mxu0 0.0
  %40 = vmatprep.subr.mxu0 0.0
  %41 = vmatpush1.msra.mxu0 0.0
  %42 = vmatprep.subr.mxu0 0.0
  %43 = vmatpush1.msra.mxu0 0.0
  %44 = vmatprep.subr.mxu0 0.0
  %45 = vmatpush1.msra.mxu0 0.0
  %46 = vmatprep.subr.mxu0 0.0
  %47 = vmatpush1.msra.mxu0 0.0
  %48 = vmatprep.subr.mxu0 0.0
  %49 = vmatpush1.msra.mxu0 0.0
  %50 = vmatprep.subr.mxu0 0.0
  %51 = vmatpush1.msra.mxu0 0.0
  %52 = vmatprep.subr.mxu0 0.0
  %53 = vmatpush1.msra.mxu0 0.0
  %54 = vmatprep.subr.mxu0 0.0
  %55 = vmatpush1.msra.mxu0 0.0
  %56 = vmatprep.subr.mxu0 0.0
  %57 = vmatpush1.msra.mxu0 0.0
  %58 = vmatprep.subr.mxu0 0.0
  %59 = vmatpush1.msra.mxu0 0.0
  %60 = vmatprep.subr.mxu0 %v18
  %61 = vmatpush1.msra.mxu0 %v17
  %62 = vmatprep.subr.mxu0 0.0
  %63 = vmatpush2.msra.mxu0 0.0
  %64 = vmatprep.subr.mxu0 0.0
  %65 = vmatpush2.msra.mxu0 0.0
  %66 = vmatprep.subr.mxu0 0.0
  %67 = vmatpush2.msra.mxu0 0.0
  %68 = vmatprep.subr.mxu0 0.0
  %69 = vmatpush2.msra.mxu0 0.0
  %70 = vmatprep.subr.mxu0 0.0
  %71 = vmatpush2.msra.mxu0 0.0
  %72 = vmatprep.subr.mxu0 0.0
  %73 = vmatpush2.msra.mxu0 0.0
  %74 = vmatprep.subr.mxu0 0.0
  %75 = vmatpush2.msra.mxu0 0.0
  %76 = vmatprep.subr.mxu0 0.0
  %77 = vmatpush2.msra.mxu0 0.0
  %78 = vmatprep.subr.mxu0 0.0
  %79 = vmatpush2.msra.mxu0 0.0
  %80 = vmatprep.subr.mxu0 0.0
  %81 = vmatpush2.msra.mxu0 0.0
  %82 = vmatprep.subr.mxu0 0.0
  %83 = vmatpush2.msra.mxu0 0.0
  %84 = vmatprep.subr.mxu0 0.0
  %85 = vmatpush2.msra.mxu0 0.0
  %86 = vmatprep.subr.mxu0 0.0
  %87 = vmatpush2.msra.mxu0 0.0
  %88 = vmatprep.subr.mxu0 0.0
  %89 = vmatpush2.msra.mxu0 0.0
  %90 = vmatprep.subr.mxu0 0.0
  %91 = vmatpush2.msra.mxu0 0.0
  %92 = vmatprep.subr.mxu0 0.0
  %93 = vmatpush2.msra.mxu0 0.0
  %94 = vmatprep.mubr.f32.mxu0 0.0
  %95 = vmatmul.mubr.f32.gmra.mxu0 %v28
  %v96 = vpop.f32.mrf.mxu0
  %v97 = vadd.f32 %v24, %v96
  %v98 = vpop.f32.mrf.mxu0
  %v99 = vadd.f32 %v24, %v98
  %100 = vdwg.mxu0
  %v101 = vmul.f32 %v97, %v97
  %v102 = vmul.f32 %v99, %v99
  %v103 = vmul.f32 %v97, %v101
  %v104 = vmul.f32 %v99, %v102
  %v105 = vmul.f32 %v103, 0.044715
  %v106 = vmul.f32 %v104, 0.044715
  %v107 = vadd.f32 %v97, %v105
  %v108 = vadd.f32 %v99, %v106
  %v109 = vmul.f32 %v107, 0.7978846
  %v110 = vmul.f32 %v108, 0.7978846
  %v111 = vtanh.pop %v109
  %v112 = vtanh.pop %v110
  %v113 = vadd.f32 %v111, 1.0
  %v114 = vadd.f32 %v112, 1.0
  %v115 = vmul.f32 %v113, 0.5
  %v116 = vmul.f32 %v114, 0.5
  %v117 = vmul.f32 %v97, %v115
  %v118 = vmul.f32 %v99, %v116
  %v119 = vld [vmem:[%s2] sm:$0xff]
  %v121 = vsel %vm26, %v119, 0
  %123 = vmatprep.subr.mxu0 0.0
  %124 = vmatpush1.msra.mxu0 0.0
  %125 = vmatprep.subr.mxu0 0.0
  %126 = vmatpush1.msra.mxu0 0.0
  %127 = vmatprep.subr.mxu0 0.0
  %128 = vmatpush1.msra.mxu0 0.0
  %129 = vmatprep.subr.mxu0 0.0
  %130 = vmatpush1.msra.mxu0 0.0
  %131 = vmatprep.subr.mxu0 0.0
  %132 = vmatpush1.msra.mxu0 0.0
  %133 = vmatprep.subr.mxu0 0.0
  %134 = vmatpush1.msra.mxu0 0.0
  %135 = vmatprep.subr.mxu0 0.0
  %136 = vmatpush1.msra.mxu0 0.0
  %137 = vmatprep.subr.mxu0 0.0
  %138 = vmatpush1.msra.mxu0 0.0
  %139 = vmatprep.subr.mxu0 0.0
  %140 = vmatpush1.msra.mxu0 0.0
  %141 = vmatprep.subr.mxu0 0.0
  %142 = vmatpush1.msra.mxu0 0.0
  %143 = vmatprep.subr.mxu0 0.0
  %144 = vmatpush1.msra.mxu0 0.0
  %145 = vmatprep.subr.mxu0 0.0
  %146 = vmatpush1.msra.mxu0 0.0
  %147 = vmatprep.subr.mxu0 0.0
  %148 = vmatpush1.msra.mxu0 0.0
  %149 = vmatprep.subr.mxu0 0.0
  %150 = vmatpush1.msra.mxu0 0.0
  %151 = vmatprep.subr.mxu0 0.0
  %152 = vmatpush1.msra.mxu0 0.0
  %153 = vmatprep.subr.mxu0 %v118
  %154 = vmatpush1.msra.mxu0 %v117
  %155 = vmatprep.subr.mxu0 0.0
  %156 = vmatpush2.msra.mxu0 0.0
  %157 = vmatprep.subr.mxu0 0.0
  %158 = vmatpush2.msra.mxu0 0.0
  %159 = vmatprep.subr.mxu0 0.0
  %160 = vmatpush2.msra.mxu0 0.0
  %161 = vmatprep.subr.mxu0 0.0
  %162 = vmatpush2.msra.mxu0 0.0
  %163 = vmatprep.subr.mxu0 0.0
  %164 = vmatpush2.msra.mxu0 0.0
  %165 = vmatprep.subr.mxu0 0.0
  %166 = vmatpush2.msra.mxu0 0.0
  %167 = vmatprep.subr.mxu0 0.0
  %168 = vmatpush2.msra.mxu0 0.0
  %169 = vmatprep.subr.mxu0 0.0
  %170 = vmatpush2.msra.mxu0 0.0
  %171 = vmatprep.subr.mxu0 0.0
  %172 = vmatpush2.msra.mxu0 0.0
  %173 = vmatprep.subr.mxu0 0.0
  %174 = vmatpush2.msra.mxu0 0.0
  %175 = vmatprep.subr.mxu0 0.0
  %176 = vmatpush2.msra.mxu0 0.0
  %177 = vmatprep.subr.mxu0 0.0
  %178 = vmatpush2.msra.mxu0 0.0
  %179 = vmatprep.subr.mxu0 0.0
  %180 = vmatpush2.msra.mxu0 0.0
  %181 = vmatprep.subr.mxu0 0.0
  %182 = vmatpush2.msra.mxu0 0.0
  %183 = vmatprep.subr.mxu0 0.0
  %184 = vmatpush2.msra.mxu0 0.0
  %185 = vmatprep.subr.mxu0 0.0
  %186 = vmatpush2.msra.mxu0 0.0
  %187 = vmatprep.mubr.f32.mxu0 0.0
  %188 = vmatmul.mubr.f32.gmra.mxu0 %v121
  %v189 = vpop.f32.mrf.mxu0
  %v190 = vadd.f32 0.0, %v189
  %v191 = vpop.f32.mrf.mxu0
  %v192 = vadd.f32 0.0, %v191
  %193 = vdwg.mxu0
  %194 = vst [vmem:[%s4] sm:$0xff] %v190
  %195 = vst [vmem:[%s4 + $0x8] sm:$0xff] %v192
  // Predicated region
  $region18: #{inner_model.1} parent=0 // pred_check
    _
  $region19: #{inner_model.1} parent=0 // pred_check_branch
    %197 = sbr.rel (0) target = $region21
  $region20: #{inner_model.1} parent=0 // pred_region
    _
  $region21: #{inner_model.1} parent=0 // pred_fallthru
    _
  // Predicated region
  $region22: #{inner_model.1} parent=0 // pred_check
    _
  $region23: #{inner_model.1} parent=0 // pred_check_branch
    %199 = sbr.rel (0) target = $region25
  $region24: #{inner_model.1} parent=0 // pred_region
    _
  $region25: #{inner_model.1} parent=0 // pred_fallthru
    _

</llo_original>
